<compile_context>
chip_gen: v5e
topology: v5e:2x2
jax: 0.10.0
libtpu: 0.0.40
codegen_flags: <defaults>
</compile_context>

<pallas_src>
import functools

import jax
import jax.numpy as jnp
from jax.experimental import pallas as pl
from jax.experimental.pallas import tpu as pltpu


# Packed-parameter slab (f32, shape (8, 128) == exactly one vreg).  Everything is stored
# pre-transposed for the feature-major kernel and stays inside one 8-sublane band:
#   w1t  : rows 0:8, cols  0:10   (8, 10)   fc1 weight^T   (in=10 -> h1=8)
#   w2t  : rows 0:7, cols 16:24   (7, 8)    fc2 weight^T   (h1=8  -> h2=7)
#   w4ot : rows 0:2, cols 32:39   (2, 7)    (fc4 @ out)^T  (h2=7  -> out=2), folded
#   b1   : rows 0:8, col  48      (8, 1)
#   b2   : rows 0:7, col  49      (7, 1)
#   b4o  : rows 0:2, col  50      (2, 1)    folded b4 @ wo + bo, as a column
_SLAB_ROWS = 8
_SLAB_COLS = 128


def _mlp_kernel(x_ref, slab_ref, o_ref):
    x = x_ref[...].astype(jnp.float32)   # (in_f, TB) feature-major, batch on lanes
    slab = slab_ref[...]                 # (8, 128) packed params

    w1t = slab[0:8, 0:10]                # (8, 10)
    w2t = slab[0:7, 16:24]               # (7, 8)
    w4ot = slab[0:2, 32:39]              # (2, 7)
    b1 = slab[0:8, 48:49]                # (8, 1) broadcasts over lanes
    b2 = slab[0:7, 49:50]                # (7, 1)
    b4o = slab[0:2, 50:51]               # (2, 1)

    # fc1 -> sigmoid   (lane-dense: result is (8, TB))
    h = jax.nn.sigmoid(jnp.dot(w1t, x, preferred_element_type=jnp.float32) + b1)
    # fc2 -> sigmoid   ((7, TB))
    h = jax.nn.sigmoid(jnp.dot(w2t, h, preferred_element_type=jnp.float32) + b2)
    # Dropout(p=0.3): identity in eval mode (see TODO above).
    # fc4 and out folded into one matmul; final sigmoid (exp on EUP).  ((2, TB))
    out = jax.nn.sigmoid(jnp.dot(w4ot, h, preferred_element_type=jnp.float32) + b4o)
    o_ref[...] = out.astype(o_ref.dtype)


def _pack_params(params):
    """Fold fc4/out, transpose for the feature-major kernel, pack into one (8,128) slab."""
    w1, b1, w2, b2, w4, b4, wo, bo = params
    # No nonlinearity between fc4 and out -> fold: (h@w4+b4)@wo+bo == h@(w4@wo) + (b4@wo+bo)
    w4o = w4 @ wo                 # (7, 2)
    b4o = b4 @ wo + bo            # (1, 2)
    slab = jnp.zeros((_SLAB_ROWS, _SLAB_COLS), jnp.float32)
    slab = slab.at[0:8, 0:10].set(w1.T)
    slab = slab.at[0:7, 16:24].set(w2.T)
    slab = slab.at[0:2, 32:39].set(w4o.T)
    slab = slab.at[0:8, 48:49].set(b1.T)
    slab = slab.at[0:7, 49:50].set(b2.T)
    slab = slab.at[0:2, 50:51].set(b4o.T)
    return slab


def _default_block_b(B):
    # Batch lives on the lane axis, so a tile must be a multiple of 128 lanes (or the full batch).
    if B % 128 != 0 or B <= 1024:
        return B
    for cand in (1024, 512, 256, 128):
        if B % cand == 0:
            return cand
    return B


@functools.partial(jax.jit, static_argnames=("block_b",))
def rainfall_mlp(x, params, *, block_b=None):
    """x: (B, in_features) exactly as the PyTorch module expects. Returns (B, out_features)."""
    B, in_f = x.shape
    out_f = params[-1].shape[-1]          # bo: (1, out_features)

    if block_b is None:
        block_b = _default_block_b(B)
    assert B % block_b == 0, "batch must be a multiple of block_b"
    assert block_b == B or block_b % 128 == 0, (
        "block_b must be a multiple of 128 (batch is on the lane axis) or equal to B")

    # Layout plumbing in the wrapper: feature-major x, lane-dense kernel output.
    xt = x.T                              # (in_f, B)
    slab = _pack_params(params)

    n_steps = B // block_b
    x_spec_kwargs = {}
    if n_steps > 1:
        # DMA-latency-bound per tile: triple-buffer the x read (sweepable 2 vs 3).
        x_spec_kwargs = dict(pipeline_mode=pl.Buffered(3))

    cost = pl.CostEstimate(
        flops=2 * B * (in_f * 8 + 8 * 7 + 7 * out_f),
        transcendentals=B * (8 + 7 + out_f),                       # sigmoids
        bytes_accessed=(x.size * x.dtype.itemsize                  # x read (dominant)
                        + B * out_f * 4                            # output write
                        + _SLAB_ROWS * _SLAB_COLS * 4),            # params
    )

    out_t = pl.pallas_call(
        _mlp_kernel,
        out_shape=jax.ShapeDtypeStruct((out_f, B), jnp.float32),
        grid_spec=pltpu.PrefetchScalarGridSpec(
            num_scalar_prefetch=0,
            grid=(n_steps,),
            in_specs=[
                pl.BlockSpec((in_f, block_b), lambda i: (0, i), **x_spec_kwargs),  # x tile
                pl.BlockSpec((_SLAB_ROWS, _SLAB_COLS), lambda i: (0, 0)),          # params
            ],
            out_specs=pl.BlockSpec((out_f, block_b), lambda i: (0, i)),
        ),
        compiler_params=pltpu.CompilerParams(
            dimension_semantics=("parallel",)),
        cost_estimate=cost,
    )(xt, slab)

    return out_t.T                         # back to (B, out_features)


def init_linear(key, fan_in, fan_out):
    # Mirrors PyTorch nn.Linear init: U(-1/sqrt(fan_in), 1/sqrt(fan_in)).
    kw, kb = jax.random.split(key)
    bound = 1.0 / (fan_in ** 0.5)
    w = jax.random.uniform(kw, (fan_in, fan_out), jnp.float32, -bound, bound)
    b = jax.random.uniform(kb, (1, fan_out), jnp.float32, -bound, bound)
    return w, b


def make_params(key, in_features=10, h1=8, h2=7, h3=4, out_features=2):
    k1, k2, k4, ko = jax.random.split(key, 4)
    w1, b1 = init_linear(k1, in_features, h1)
    w2, b2 = init_linear(k2, h1, h2)
    w4, b4 = init_linear(k4, h2, h3)
    wo, bo = init_linear(ko, h3, out_features)   # see TODO(synk): `out` sized from h3
    return (w1, b1, w2, b2, w4, b4, wo, bo)


def reference_forward(x, params):
    # Pure-JAX, UNFUSED reference of the same forward data-flow (dropout = identity).
    w1, b1, w2, b2, w4, b4, wo, bo = params
    h = jax.nn.sigmoid(x @ w1 + b1)
    h = jax.nn.sigmoid(h @ w2 + b2)
    h = h @ w4 + b4
    return jax.nn.sigmoid(h @ wo + bo)


if __name__ == "__main__":
    key = jax.random.PRNGKey(0)
    kx, kx2, kp = jax.random.split(key, 3)

    in_features = 10
    params = make_params(kp, in_features=in_features)

    # Small batch: single grid step (block_b = B).
    B = 16
    x = jax.random.normal(kx, (B, in_features), jnp.float32)
    out = jax.block_until_ready(rainfall_mlp(x, params))
    ref = reference_forward(x, params)
    assert out.shape == (B, 2)
    assert jnp.allclose(out, ref, atol=1e-5, rtol=1e-5), "mismatch vs JAX reference (B=16)"

    # Larger batch: exercises the tiled, pipelined (Buffered(3)) multi-step path.
    B2 = 256
    x2 = jax.random.normal(kx2, (B2, in_features), jnp.float32)
    out2 = jax.block_until_ready(rainfall_mlp(x2, params, block_b=128))
    ref2 = reference_forward(x2, params)
    assert out2.shape == (B2, 2)
    assert jnp.allclose(out2, ref2, atol=1e-5, rtol=1e-5), "mismatch vs JAX reference (B=256)"

    print("KERNEL_OK")
</pallas_src>

<mosaic_0001>
module attributes {stable_mosaic.version = 11 : i64} {
  func.func @_mlp_kernel(%arg0: i32, %arg1: memref<10x16xf32, #tpu.memory_space<vmem>>, %arg2: memref<8x128xf32, #tpu.memory_space<vmem>>, %arg3: memref<2x16xf32, #tpu.memory_space<vmem>>) attributes {dimension_semantics = [#tpu.dimension_semantics<parallel>], iteration_bounds = array<i64: 1>, scalar_prefetch = 0 : i64, scratch_operands = 0 : i64, tpu.core_type = #tpu.core_type<tc>, window_params = [{transform_indices = @transform_0, window_bounds = array<i64: 10, 16>}, {pipeline_mode = #tpu.pipeline_mode<synchronous>, transform_indices = @transform_1, window_bounds = array<i64: 8, 128>}, {transform_indices = @transform_2, window_bounds = array<i64: 2, 16>}]} {
    %c0 = arith.constant 0 : index
    %c0_0 = arith.constant 0 : index
    %0 = vector.load %arg1[%c0, %c0_0] : memref<10x16xf32, #tpu.memory_space<vmem>>, vector<10x16xf32>
    %c0_1 = arith.constant 0 : index
    %c0_2 = arith.constant 0 : index
    %1 = vector.load %arg2[%c0_1, %c0_2] : memref<8x128xf32, #tpu.memory_space<vmem>>, vector<8x128xf32>
    %2 = vector.extract_strided_slice %1 {offsets = [0, 0], sizes = [8, 10], strides = [1, 1]} : vector<8x128xf32> to vector<8x10xf32>
    %3 = vector.extract_strided_slice %1 {offsets = [0, 16], sizes = [7, 8], strides = [1, 1]} : vector<8x128xf32> to vector<7x8xf32>
    %4 = vector.extract_strided_slice %1 {offsets = [0, 32], sizes = [2, 7], strides = [1, 1]} : vector<8x128xf32> to vector<2x7xf32>
    %5 = vector.extract_strided_slice %1 {offsets = [0, 48], sizes = [8, 1], strides = [1, 1]} : vector<8x128xf32> to vector<8x1xf32>
    %6 = vector.extract_strided_slice %1 {offsets = [0, 49], sizes = [7, 1], strides = [1, 1]} : vector<8x128xf32> to vector<7x1xf32>
    %7 = vector.extract_strided_slice %1 {offsets = [0, 50], sizes = [2, 1], strides = [1, 1]} : vector<8x128xf32> to vector<2x1xf32>
    %cst = arith.constant dense<0.000000e+00> : vector<8x16xf32>
    %8 = tpu.matmul %2, %0, %cst {dimension_numbers = #tpu.dot_dimension_numbers<[1], [0], [0], [1], [0, 0, 1, 1], [], []>} : vector<8x10xf32>, vector<10x16xf32>, vector<8x16xf32> -> vector<8x16xf32>
    %9 = vector.broadcast %5 : vector<8x1xf32> to vector<8x16xf32>
    %10 = arith.addf %8, %9 : vector<8x16xf32>
    %11 = arith.negf %10 : vector<8x16xf32>
    %12 = math.exp %11 : vector<8x16xf32>
    %cst_3 = arith.constant 1.000000e+00 : f32
    %13 = vector.broadcast %cst_3 : f32 to vector<8x16xf32>
    %14 = arith.addf %13, %12 : vector<8x16xf32>
    %15 = arith.divf %13, %14 : vector<8x16xf32>
    %cst_4 = arith.constant dense<0.000000e+00> : vector<7x16xf32>
    %16 = tpu.matmul %3, %15, %cst_4 {dimension_numbers = #tpu.dot_dimension_numbers<[1], [0], [0], [1], [0, 0, 1, 1], [], []>} : vector<7x8xf32>, vector<8x16xf32>, vector<7x16xf32> -> vector<7x16xf32>
    %17 = vector.broadcast %6 : vector<7x1xf32> to vector<7x16xf32>
    %18 = arith.addf %16, %17 : vector<7x16xf32>
    %19 = arith.negf %18 : vector<7x16xf32>
    %20 = math.exp %19 : vector<7x16xf32>
    %cst_5 = arith.constant 1.000000e+00 : f32
    %21 = vector.broadcast %cst_5 : f32 to vector<7x16xf32>
    %22 = arith.addf %21, %20 : vector<7x16xf32>
    %23 = arith.divf %21, %22 : vector<7x16xf32>
    %cst_6 = arith.constant dense<0.000000e+00> : vector<2x16xf32>
    %24 = tpu.matmul %4, %23, %cst_6 {dimension_numbers = #tpu.dot_dimension_numbers<[1], [0], [0], [1], [0, 0, 1, 1], [], []>} : vector<2x7xf32>, vector<7x16xf32>, vector<2x16xf32> -> vector<2x16xf32>
    %25 = vector.broadcast %7 : vector<2x1xf32> to vector<2x16xf32>
    %26 = arith.addf %24, %25 : vector<2x16xf32>
    %27 = arith.negf %26 : vector<2x16xf32>
    %28 = math.exp %27 : vector<2x16xf32>
    %cst_7 = arith.constant 1.000000e+00 : f32
    %29 = vector.broadcast %cst_7 : f32 to vector<2x16xf32>
    %30 = arith.addf %29, %28 : vector<2x16xf32>
    %31 = arith.divf %29, %30 : vector<2x16xf32>
    %c0_8 = arith.constant 0 : index
    %c0_9 = arith.constant 0 : index
    %32 = vector.load %arg3[%c0_8, %c0_9] : memref<2x16xf32, #tpu.memory_space<vmem>>, vector<2x16xf32>
    tpu.vector_store %arg3[%c0_8, %c0_9], %31 {strides = array<i32>} : memref<2x16xf32, #tpu.memory_space<vmem>>, vector<2x16xf32>,
    return
  }
  func.func @transform_0(%arg0: i32) -> (i32, i32) {
    %c0_i32 = arith.constant 0 : i32
    %c0_i32_0 = arith.constant 0 : i32
    return %c0_i32, %arg0 : i32, i32
  }
  func.func @transform_1(%arg0: i32) -> (i32, i32) {
    %c0_i32 = arith.constant 0 : i32
    %c0_i32_0 = arith.constant 0 : i32
    %c0_i32_1 = arith.constant 0 : i32
    return %c0_i32, %c0_i32_0 : i32, i32
  }
  func.func @transform_2(%arg0: i32) -> (i32, i32) {
    %c0_i32 = arith.constant 0 : i32
    %c0_i32_0 = arith.constant 0 : i32
    return %c0_i32, %arg0 : i32, i32
  }
}

</mosaic_0001>

<llo_original>
// kernel: rainfall_mlp.1
$region0: #{rainfall_mlp.1}
  #allocation0 [shape = 'u32[]', space=smem, size = 0x4, offset = 0x4, fixed_abs, tag = 'smem constant byte address 0x4 - core index']
  #allocation1 [shape = 'u32[72,128]{1,0:T(1,128)}', space=vmem, size = 0x9000, scoped, tag = 'internal scratch']
  %s0 = inlined_call_operand.vmem [shape: f32[10,16], index: 0, kind: input, shape index: {}]
  %s1 = inlined_call_operand.vmem [shape: f32[8,128], index: 1, kind: input, shape index: {}]
  %s2 = inlined_call_operand.hbm [shape: f32[2,16], index: 2, kind: output, shape index: {}]
  %s3 = sld [smem:[#allocation0]]
  $region18: #{rainfall_mlp.1} parent=0
    _
  %s5 = ssub.s32 1, %s3
  %s6 = scalar_select 0, %s5, %s3
  $region1: #{rainfall_mlp.1} parent=0
    #allocation2 [shape = 'u8[1024]{0}', space=vmem, size = 0x400, scoped, tag = 'output window, operand 0, single buffered']
    #allocation3 [shape = 's32[1]{0}', space=sflag, size = 0x4, scoped, tag = 'scoped memory for rainfall_mlp.1']
    %7 = vsyncpa [#allocation3], 0
    // Predicated region
    $region2: #{rainfall_mlp.1} parent=1 // pred_check
      _
    $region3: #{rainfall_mlp.1} parent=1 // pred_check_branch
      %9 = sbr.rel (0) target = $region5
    $region4: #{rainfall_mlp.1} parent=1 // pred_region
      _
    $region5: #{rainfall_mlp.1} parent=1 // pred_fallthru
      _
    // Predicated region
    $region6: #{rainfall_mlp.1} parent=1 // pred_check
      _
    $region7: #{rainfall_mlp.1} parent=1 // pred_check_branch
      %11 = sbr.rel (0) target = $region9
    $region8: #{rainfall_mlp.1} parent=1 // pred_region
      _
    $region9: #{rainfall_mlp.1} parent=1 // pred_fallthru
      _
    %v12 = vld [vmem:[%s0] sm:$0xff]
    %v13 = vld [vmem:[%s0 + $0x8] sm:$0x3]
    %v14 = vld [vmem:[%s1] sm:$0xff]
    %16 = vset.pattern.permute.xlu0 48
    %17 = vperm.xlu0 %16, %v14
    %v18 = vpop.permute.xlu0 %17
    %vm20 = vcmask 80896
    %v21 = vsel %vm20, %v14, 0
    %vm23 = vcmask 1041408
    %v25 = vsel %vm23, %v13, 0
    %27 = vmatpush.msra.mxu0 0.0
    %28 = vmatpush.msra.mxu0 0.0
    %29 = vmatpush.msra.mxu0 0.0
    %30 = vmatpush.msra.mxu0 0.0
    %31 = vmatpush.msra.mxu0 0.0
    %32 = vmatpush.msra.mxu0 0.0
    %33 = vmatpush.msra.mxu0 0.0
    %34 = vmatpush.msra.mxu0 0.0
    %35 = vmatpush.msra.mxu0 0.0
    %36 = vmatpush.msra.mxu0 0.0
    %37 = vmatpush.msra.mxu0 0.0
    %38 = vmatpush.msra.mxu0 0.0
    %39 = vmatpush.msra.mxu0 0.0
    %40 = vmatpush.msra.mxu0 0.0
    %41 = vmatpush.msra.mxu0 %v25
    %42 = vmatpush.msra.mxu0 %v12
    %43 = vmatmul.f32.gmra.mxu0 %v21
    %v44 = vpop.f32.mrf.mxu0
    %v45 = vadd.f32 %v18, %v44
    %46 = vdwg.mxu0
    %v47 = vxor.u32 %v45, 2147483648
    %v48 = vmul.f32 %v47, 1.442695
    %v49 = vpow.pop %v48
    %v50 = vadd.f32 %v49, 1.0
    %v51 = vrcp.pop %v50
    %v52 = vmul.f32 %v50, %v51
    %v53 = vsub.f32 1.0, %v52
    %v54 = vmul.f32 %v51, %v53
    %v55 = vadd.f32 %v51, %v54
    %vm56 = vweird.f32 %v50
    %vm57 = vweird.f32 %v51
    %vm58 = vmor %vm56, %vm57
    %v59 = vsel %vm58, %v51, %v55
    %v60 = vand.u32 2147483647, %v50
    %vm61 = vcmp.eq.f32.partialorder %v60, 8.507059e+37
    %v62 = vand.u32 %v50, 2147483648
    %v63 = vor.u32 1.1754944e-38, %v62
    %v64 = vsel %vm61, %v63, %v59
    %v65 = vmul.f32 1.0, %v64
    %66 = vset.pattern.permute.xlu0 49
    %67 = vperm.xlu0 %66, %v14
    %v68 = vpop.permute.xlu0 %67
    %70 = vrot.lane.b32.xlu0 %v14, 112
    %v71 = vpop.permute.xlu0 %70
    %vm72 = vcmask 64512
    %v73 = vsel %vm72, %v71, 0
    %75 = vmatpush.msra.mxu0 0.0
    %76 = vmatpush.msra.mxu0 0.0
    %77 = vmatpush.msra.mxu0 0.0
    %78 = vmatpush.msra.mxu0 0.0
    %79 = vmatpush.msra.mxu0 0.0
    %80 = vmatpush.msra.mxu0 0.0
    %81 = vmatpush.msra.mxu0 0.0
    %82 = vmatpush.msra.mxu0 0.0
    %83 = vmatpush.msra.mxu0 0.0
    %84 = vmatpush.msra.mxu0 0.0
    %85 = vmatpush.msra.mxu0 0.0
    %86 = vmatpush.msra.mxu0 0.0
    %87 = vmatpush.msra.mxu0 0.0
    %88 = vmatpush.msra.mxu0 0.0
    %89 = vmatpush.msra.mxu0 0.0
    %90 = vmatpush.msra.mxu0 %v65
    %91 = vmatmul.f32.gmra.mxu0 %v73
    %v92 = vpop.f32.mrf.mxu0
    %v93 = vadd.f32 %v68, %v92
    %94 = vdwg.mxu0
    %v95 = vxor.u32 %v93, 2147483648
    %v96 = vmul.f32 %v95, 1.442695
    %v97 = vpow.pop %v96
    %v98 = vadd.f32 %v97, 1.0
    %v99 = vrcp.pop %v98
    %v100 = vmul.f32 %v98, %v99
    %v101 = vsub.f32 1.0, %v100
    %v102 = vmul.f32 %v99, %v101
    %v103 = vadd.f32 %v99, %v102
    %vm104 = vweird.f32 %v98
    %vm105 = vweird.f32 %v99
    %vm106 = vmor %vm104, %vm105
    %v107 = vsel %vm106, %v99, %v103
    %v108 = vand.u32 2147483647, %v98
    %vm109 = vcmp.eq.f32.partialorder %v108, 8.507059e+37
    %v110 = vand.u32 %v98, 2147483648
    %v111 = vor.u32 1.1754944e-38, %v110
    %v112 = vsel %vm109, %v111, %v107
    %v113 = vmul.f32 1.0, %v112
    %114 = vset.pattern.permute.xlu0 50
    %115 = vperm.xlu0 %114, %v14
    %v116 = vpop.permute.xlu0 %115
    %118 = vrot.lane.b32.xlu0 %v14, 96
    %v119 = vpop.permute.xlu0 %118
    %vm120 = vcmask 56320
    %v121 = vsel %vm120, %v119, 0
    %vm123 = vcmask 1046528
    %v125 = vsel %vm123, %v113, 0
    %127 = vmatpush.msra.mxu0 0.0
    %128 = vmatpush.msra.mxu0 0.0
    %129 = vmatpush.msra.mxu0 0.0
    %130 = vmatpush.msra.mxu0 0.0
    %131 = vmatpush.msra.mxu0 0.0
    %132 = vmatpush.msra.mxu0 0.0
    %133 = vmatpush.msra.mxu0 0.0
    %134 = vmatpush.msra.mxu0 0.0
    %135 = vmatpush.msra.mxu0 0.0
    %136 = vmatpush.msra.mxu0 0.0
    %137 = vmatpush.msra.mxu0 0.0
    %138 = vmatpush.msra.mxu0 0.0
    %139 = vmatpush.msra.mxu0 0.0
    %140 = vmatpush.msra.mxu0 0.0
    %141 = vmatpush.msra.mxu0 0.0
    %142 = vmatpush.msra.mxu0 %v125
    %143 = vmatmul.f32.gmra.mxu0 %v121
    %v144 = vpop.f32.mrf.mxu0
    %v145 = vadd.f32 %v116, %v144
    %146 = vdwg.mxu0
    %v147 = vxor.u32 %v145, 2147483648
    %v148 = vmul.f32 %v147, 1.442695
    %v149 = vpow.pop %v148
    %v150 = vadd.f32 %v149, 1.0
    %v151 = vrcp.pop %v150
    %v152 = vmul.f32 %v150, %v151
    %v153 = vsub.f32 1.0, %v152
    %v154 = vmul.f32 %v151, %v153
    %v155 = vadd.f32 %v151, %v154
    %vm156 = vweird.f32 %v150
    %vm157 = vweird.f32 %v151
    %vm158 = vmor %vm156, %vm157
    %v159 = vsel %vm158, %v151, %v155
    %v160 = vand.u32 2147483647, %v150
    %vm161 = vcmp.eq.f32.partialorder %v160, 8.507059e+37
    %v162 = vand.u32 %v150, 2147483648
    %v163 = vor.u32 1.1754944e-38, %v162
    %v164 = vsel %vm161, %v163, %v159
    %v165 = vmul.f32 1.0, %v164
    %vm166 = vcmask 123904
    %167 = vst.msk [vmem:[#allocation2] sm:$0x3] %vm166, %v165
    // Predicated region
    $region10: #{rainfall_mlp.1} parent=1 // pred_check
      _
    $region11: #{rainfall_mlp.1} parent=1 // pred_check_branch
      %169 = sbr.rel (0) target = $region13
    $region12: #{rainfall_mlp.1} parent=1 // pred_region
      %171 = vsyncadd [#allocation3], 0
      %s173 = sshll.u32 [#allocation2], 4
      %s174 = int_to_ptr.vmem [resolvable:$true] %s173
      %s175 = sshll.u32 %s2, 4
      %s176 = int_to_ptr.hbm [resolvable:$true] %s175
      %178 = dma.vmem_to_hbm [thread:$0]  %s174, 32, %s176, [#allocation3]
    $region13: #{rainfall_mlp.1} parent=1 // pred_fallthru
      _
    // Predicated region
    $region14: #{rainfall_mlp.1} parent=1 // pred_check
      _
    $region15: #{rainfall_mlp.1} parent=1 // pred_check_branch
      %180 = sbr.rel (0) target = $region17
    $region16: #{rainfall_mlp.1} parent=1 // pred_region
      %182 = dma.done [#allocation3], 32
    $region17: #{rainfall_mlp.1} parent=1 // pred_fallthru
      _
    %183 = vsyncpa [#allocation3], 1

</llo_original>
